<compile_context>
chip_gen: v7x
topology: tpu7x:2x2x1
jax: 0.10.0
libtpu: 0.0.40
codegen_flags: <defaults>
</compile_context>

<pallas_src>
import jax
import jax.numpy as jnp
from jax.experimental import pallas as pl
from jax.experimental.pallas import tpu as pltpu


def _round_up(x, m):
    return -(-x // m) * m


def _default_num_shards():
    """2 shards only on v7x (2 TensorCores/chip); 1 elsewhere (v5e/v6e)."""
    try:
        kind = jax.devices()[0].device_kind.lower()
    except Exception:
        return 1
    return 2 if "7" in kind else 1


def _pick_fold(n, c):
    """How many original rows (k) to fold into the lane axis.

    Prefer a divisor of n so the (n, c) -> (n//k, k*c) reshape is a free
    metadata change (no HBM copy of pred).  Only fall back to padding pred
    when no divisor reaches >=50% lane utilization.
    Returns (k, need_row_pad).
    """
    k_max = max(1, 128 // c)
    if k_max <= 1:
        return 1, False
    best = 1
    for d in range(min(k_max, n), 0, -1):
        if n % d == 0:
            best = d
            break
    if best * c >= 64 or best == k_max:
        return best, False
    return k_max, True


def masked_nll_kernel(e_exp_ref, pred_ref, tgt_ref, mask_ref, out_ref):
    """Processes one (tile_n, L) folded row tile, L = k*C.

    out_ref is a tiny (1, L) per-shard accumulator: its block index is constant
    across the inner ('arbitrary') grid axis, so it stays VMEM-resident and is
    written back to HBM once per shard.
    """
    i = pl.program_id(1)

    @pl.when(i == 0)
    def _():
        out_ref[...] = jnp.zeros_like(out_ref)

    pred = pred_ref[...]                 # (TN, L) native dtype (no full-tile f32 cast)
    tgt = tgt_ref[...]                   # (TN, K) int32, lane-offset encoded, -1 = invalid/pad
    msk = mask_ref[...]                  # (TN, K) f32

    tn, l = pred.shape
    k = tgt.shape[1]

    col = jax.lax.broadcasted_iota(jnp.int32, (tn, l), 1)

    if k > 1:
        # Lane-expand the per-sub-row targets and mask with two tiny MXU
        # matmuls against the constant 0/1 expansion matrix E (K, L),
        # E[j, l] = (l // C == j).  Values are small integers / mask weights,
        # so the expansion is exact regardless of matmul precision.
        e = e_exp_ref[...]                                            # (K, L) f32
        tgt_exp = jnp.dot(tgt.astype(jnp.float32), e,
                          preferred_element_type=jnp.float32)         # (TN, L)
        msk_exp = jnp.dot(msk, e, preferred_element_type=jnp.float32)  # (TN, L)
        sel = col.astype(jnp.float32) == tgt_exp
    else:
        # Large-C path: target/mask are (TN, 1) and broadcast along lanes.
        sel = col == tgt
        msk_exp = msk

    # Select in pred's native dtype (sentinel targets select nothing, so
    # garbage rows from the clamped/partial last pred block contribute 0).
    picked = jnp.where(sel, pred, jnp.zeros_like(pred))               # (TN, L)
    contrib = picked * msk_exp                                        # (TN, L) f32
    out_ref[...] += jnp.sum(contrib, axis=0, keepdims=True)           # (1, L)


def masked_nll_loss(pred, target, mask, *, tile_n=None, num_shards=None):
    """pred: (N, C) log-probs (any float dtype), target: (N,), mask: (B, S) with B*S == N."""
    n, c = pred.shape
    itemsize = jnp.dtype(pred.dtype).itemsize

    if num_shards is None:
        num_shards = _default_num_shards()

    # ---- fold k rows into the lane axis (lane-dense vregs for small C) -----
    k, need_pad = _pick_fold(n, c)
    n_rows = _round_up(n, k) if need_pad else n
    if n_rows != n:
        # Rare fallback (no usable divisor of N): pads/copies pred once.
        pred = jnp.pad(pred, ((0, n_rows - n), (0, 0)))
    n_fold = n_rows // k
    l = k * c
    pred_fold = pred.reshape(n_fold, l)      # free reshape for contiguous row-major pred

    # ---- VMEM-aware row tile (in folded rows) -------------------------------
    sub = max(8, (8 * 4) // itemsize)        # sublane packing: 8 f32 / 16 bf16 / 32 int8
    l_pad = _round_up(l, 128)
    # double-buffered pred + tgt + mask blocks, plus ~4 full-tile f32 temporaries
    per_row = 2 * (l_pad * itemsize + 2 * 128 * 4) + 4 * l_pad * 4
    if tile_n is None:
        tile_n = max(sub, min(4096, (12 * 1024 * 1024) // per_row))
    tile_n = _round_up(max(int(tile_n), sub), sub)

    rows_per_shard = pl.cdiv(n_fold, num_shards)
    tile_n = min(tile_n, _round_up(rows_per_shard, sub))
    tiles_per_shard = pl.cdiv(rows_per_shard, tile_n)
    rows_total = num_shards * tiles_per_shard * tile_n
    last_blk = pl.cdiv(n_fold, tile_n) - 1

    # ---- targets / mask: lane-offset encode, fold lane-dense, pad the tail ---
    tgt = target.reshape(-1).astype(jnp.int32)
    offs = (jnp.arange(n, dtype=jnp.int32) % k) * c
    # Out-of-range targets get the -1 sentinel (contribute 0; PyTorch would raise).
    tgt_off = jnp.where((tgt >= 0) & (tgt < c), tgt + offs, -1)
    msk = mask.reshape(-1).astype(jnp.float32)

    pad_t = rows_total * k - n               # tiny: only tgt/mask are padded, never pred
    tgt_fold = jnp.pad(tgt_off, (0, pad_t), constant_values=-1).reshape(rows_total, k)
    msk_fold = jnp.pad(msk, (0, pad_t)).reshape(rows_total, k)

    # Constant 0/1 expansion matrix E (k, L): E[j, l] = (l // C == j).
    e_exp = (jnp.arange(l, dtype=jnp.int32)[None, :] // c
             == jnp.arange(k, dtype=jnp.int32)[:, None]).astype(jnp.float32)

    # pred's last block may overhang n_fold: clamp its block index (garbage rows
    # are neutralized by sentinel targets / zero mask).
    pred_map = lambda s, i: (jnp.minimum(s * tiles_per_shard + i, last_blk), 0)
    row_map = lambda s, i: (s * tiles_per_shard + i, 0)
    out_map = lambda s, i: (s, 0, 0)

    partial = pl.pallas_call(
        masked_nll_kernel,
        out_shape=jax.ShapeDtypeStruct((num_shards, 1, l), jnp.float32),
        grid_spec=pltpu.PrefetchScalarGridSpec(
            num_scalar_prefetch=0,
            grid=(num_shards, tiles_per_shard),
            in_specs=[
                pl.BlockSpec((k, l), lambda s, i: (0, 0)),   # expansion matrix (resident)
                pl.BlockSpec((tile_n, l), pred_map),         # folded pred rows
                pl.BlockSpec((tile_n, k), row_map),          # folded offset-encoded targets
                pl.BlockSpec((tile_n, k), row_map),          # folded mask
            ],
            out_specs=pl.BlockSpec((None, 1, l), out_map),   # per-shard (1, L) accumulator
        ),
        compiler_params=pltpu.CompilerParams(
            dimension_semantics=("parallel", "arbitrary"),
            vmem_limit_bytes=32 * 1024 * 1024,               # safe on v5e/v6e/v7x
        ),
    )(e_exp, pred_fold, tgt_fold, msk_fold)

    total_mask = jnp.sum(mask.astype(jnp.float32))
    # Matches PyTorch: a fully-masked batch (sum(mask)==0) yields inf/nan.
    return -jnp.sum(partial) / total_mask


if __name__ == "__main__":
    key = jax.random.PRNGKey(0)
    B, S, C = 2, 8, 7
    N = B * S

    k1, k2, k3 = jax.random.split(key, 3)
    logits = jax.random.normal(k1, (N, C), dtype=jnp.float32)
    pred = jax.nn.log_softmax(logits, axis=-1)                 # log-probs (N, C)
    target = jax.random.randint(k2, (N,), 0, C, dtype=jnp.int32)
    mask = jax.random.bernoulli(k3, 0.7, (B, S)).astype(jnp.float32)
    mask = mask.at[0, 0].set(1.0)                              # keep sum(mask) > 0

    loss = masked_nll_loss(pred, target, mask)
    loss = jax.block_until_ready(loss)

    # pure-JAX reference check
    m_flat = mask.reshape(-1)
    picked = pred[jnp.arange(N), target]
    ref = jnp.sum(-m_flat * picked) / jnp.sum(mask)
    assert jnp.allclose(loss, ref, rtol=1e-5, atol=1e-6), (loss, ref)

    print("KERNEL_OK")
</pallas_src>

<mosaic_0001>
module attributes {stable_mosaic.version = 11 : i64} {
  func.func @masked_nll_kernel(%arg0: i32, %arg1: i32, %arg2: memref<16x112xf32, #tpu.memory_space<vmem>>, %arg3: memref<8x112xf32, #tpu.memory_space<vmem>>, %arg4: memref<8x16xi32, #tpu.memory_space<vmem>>, %arg5: memref<8x16xf32, #tpu.memory_space<vmem>>, %arg6: memref<1x1x112xf32, #tpu.memory_space<vmem>>) attributes {dimension_semantics = [#tpu.dimension_semantics<parallel>, #tpu.dimension_semantics<arbitrary>], iteration_bounds = array<i64: 1, 1>, scalar_prefetch = 0 : i64, scratch_operands = 0 : i64, tpu.core_type = #tpu.core_type<tc>, window_params = [{pipeline_mode = #tpu.pipeline_mode<synchronous>, transform_indices = @transform_0, window_bounds = array<i64: 16, 112>}, {transform_indices = @transform_1, window_bounds = array<i64: 8, 112>}, {transform_indices = @transform_2, window_bounds = array<i64: 8, 16>}, {transform_indices = @transform_3, window_bounds = array<i64: 8, 16>}, {transform_indices = @transform_4, window_bounds = array<i64: 1, 1, 112>}]} {
    %c0_i32 = arith.constant 0 : i32
    %0 = arith.cmpi eq, %arg1, %c0_i32 : i32
    %1 = arith.extui %0 : i1 to i32
    %c0_i32_0 = arith.constant 0 : i32
    %2 = arith.cmpi ne, %1, %c0_i32_0 : i32
    scf.if %2 {
      %cst_17 = arith.constant 0.000000e+00 : f32
      %24 = vector.broadcast %cst_17 : f32 to vector<1x112xf32>
      %c0_18 = arith.constant 0 : index
      %c0_19 = arith.constant 0 : index
      %c0_20 = arith.constant 0 : index
      %25 = vector.load %arg6[%c0_18, %c0_19, %c0_20] : memref<1x1x112xf32, #tpu.memory_space<vmem>>, vector<1x1x112xf32>
      %26 = vector.shape_cast %25 : vector<1x1x112xf32> to vector<1x112xf32>
      %27 = vector.shape_cast %24 : vector<1x112xf32> to vector<1x1x112xf32>
      tpu.vector_store %arg6[%c0_18, %c0_19, %c0_20], %27 {strides = array<i32>} : memref<1x1x112xf32, #tpu.memory_space<vmem>>, vector<1x1x112xf32>,
    } else {
    }
    %c0 = arith.constant 0 : index
    %c0_1 = arith.constant 0 : index
    %3 = vector.load %arg3[%c0, %c0_1] : memref<8x112xf32, #tpu.memory_space<vmem>>, vector<8x112xf32>
    %c0_2 = arith.constant 0 : index
    %c0_3 = arith.constant 0 : index
    %4 = vector.load %arg4[%c0_2, %c0_3] : memref<8x16xi32, #tpu.memory_space<vmem>>, vector<8x16xi32>
    %c0_4 = arith.constant 0 : index
    %c0_5 = arith.constant 0 : index
    %5 = vector.load %arg5[%c0_4, %c0_5] : memref<8x16xf32, #tpu.memory_space<vmem>>, vector<8x16xf32>
    %6 = tpu.iota {dimensions = array<i32: 1>} : vector<8x112xi32>
    %c0_6 = arith.constant 0 : index
    %c0_7 = arith.constant 0 : index
    %7 = vector.load %arg2[%c0_6, %c0_7] : memref<16x112xf32, #tpu.memory_space<vmem>>, vector<16x112xf32>
    %8 = arith.sitofp %4 : vector<8x16xi32> to vector<8x16xf32>
    %cst = arith.constant dense<0.000000e+00> : vector<8x112xf32>
    %9 = tpu.matmul %8, %7, %cst {dimension_numbers = #tpu.dot_dimension_numbers<[1], [0], [0], [1], [0, 0, 1, 1], [], []>} : vector<8x16xf32>, vector<16x112xf32>, vector<8x112xf32> -> vector<8x112xf32>
    %cst_8 = arith.constant dense<0.000000e+00> : vector<8x112xf32>
    %10 = tpu.matmul %5, %7, %cst_8 {dimension_numbers = #tpu.dot_dimension_numbers<[1], [0], [0], [1], [0, 0, 1, 1], [], []>} : vector<8x16xf32>, vector<16x112xf32>, vector<8x112xf32> -> vector<8x112xf32>
    %11 = arith.sitofp %6 : vector<8x112xi32> to vector<8x112xf32>
    %12 = arith.cmpf oeq, %11, %9 : vector<8x112xf32>
    %cst_9 = arith.constant 0.000000e+00 : f32
    %13 = vector.broadcast %cst_9 : f32 to vector<8x112xf32>
    %14 = arith.select %12, %3, %13 : vector<8x112xi1>, vector<8x112xf32>
    %15 = arith.mulf %14, %10 : vector<8x112xf32>
    %c0_10 = arith.constant 0 : index
    %c0_11 = arith.constant 0 : index
    %c0_12 = arith.constant 0 : index
    %16 = vector.load %arg6[%c0_10, %c0_11, %c0_12] : memref<1x1x112xf32, #tpu.memory_space<vmem>>, vector<1x1x112xf32>
    %17 = vector.shape_cast %16 : vector<1x1x112xf32> to vector<1x112xf32>
    %cst_13 = arith.constant dense<0.000000e+00> : vector<112xf32>
    %18 = vector.multi_reduction <add>, %15, %cst_13 [0] : vector<8x112xf32> to vector<112xf32>
    %19 = vector.shape_cast %18 : vector<112xf32> to vector<1x112xf32>
    %20 = arith.addf %17, %19 : vector<1x112xf32>
    %c0_14 = arith.constant 0 : index
    %c0_15 = arith.constant 0 : index
    %c0_16 = arith.constant 0 : index
    %21 = vector.load %arg6[%c0_14, %c0_15, %c0_16] : memref<1x1x112xf32, #tpu.memory_space<vmem>>, vector<1x1x112xf32>
    %22 = vector.shape_cast %21 : vector<1x1x112xf32> to vector<1x112xf32>
    %23 = vector.shape_cast %20 : vector<1x112xf32> to vector<1x1x112xf32>
    tpu.vector_store %arg6[%c0_14, %c0_15, %c0_16], %23 {strides = array<i32>} : memref<1x1x112xf32, #tpu.memory_space<vmem>>, vector<1x1x112xf32>,
    return
  }
  func.func @transform_0(%arg0: i32, %arg1: i32) -> (i32, i32) {
    %c0_i32 = arith.constant 0 : i32
    %c0_i32_0 = arith.constant 0 : i32
    %c0_i32_1 = arith.constant 0 : i32
    return %c0_i32, %c0_i32_0 : i32, i32
  }
  func.func @transform_1(%arg0: i32, %arg1: i32) -> (i32, i32) {
    %c1_i32 = arith.constant 1 : i32
    %0 = arith.muli %arg0, %c1_i32 : i32
    %1 = arith.addi %0, %arg1 : i32
    %c0_i32 = arith.constant 0 : i32
    %2 = arith.minsi %1, %c0_i32 : i32
    %c0_i32_0 = arith.constant 0 : i32
    %c0_i32_1 = arith.constant 0 : i32
    return %2, %c0_i32_0 : i32, i32
  }
  func.func @transform_2(%arg0: i32, %arg1: i32) -> (i32, i32) {
    %c1_i32 = arith.constant 1 : i32
    %0 = arith.muli %arg0, %c1_i32 : i32
    %1 = arith.addi %0, %arg1 : i32
    %c0_i32 = arith.constant 0 : i32
    %c0_i32_0 = arith.constant 0 : i32
    return %1, %c0_i32 : i32, i32
  }
  func.func @transform_3(%arg0: i32, %arg1: i32) -> (i32, i32) {
    %c1_i32 = arith.constant 1 : i32
    %0 = arith.muli %arg0, %c1_i32 : i32
    %1 = arith.addi %0, %arg1 : i32
    %c0_i32 = arith.constant 0 : i32
    %c0_i32_0 = arith.constant 0 : i32
    return %1, %c0_i32 : i32, i32
  }
  func.func @transform_4(%arg0: i32, %arg1: i32) -> (i32, i32, i32) {
    %c0_i32 = arith.constant 0 : i32
    %c0_i32_0 = arith.constant 0 : i32
    %c0_i32_1 = arith.constant 0 : i32
    return %arg0, %c0_i32, %c0_i32_0 : i32, i32, i32
  }
}

</mosaic_0001>

<llo_original>
// kernel: tpu_custom_call.1
$region0: #{tpu_custom_call.1}
  #allocation0 [shape = 'u32[]', space=smem, size = 0x4, offset = 0x4, fixed_abs, tag = 'smem constant byte address 0x4 - core index']
  #allocation1 [shape = 'u32[144,128]{1,0:T(1,128)}', space=vmem, size = 0x12000, scoped, tag = 'internal scratch']
  %s0 = inlined_call_operand.hbm [shape: f32[16,112], index: 0, kind: input, shape index: {}]
  %s1 = inlined_call_operand.vmem [shape: f32[1,112], index: 1, kind: input, shape index: {}]
  %s2 = inlined_call_operand.hbm [shape: s32[8,16], index: 2, kind: input, shape index: {}]
  %s3 = inlined_call_operand.vmem [shape: f32[8,16], index: 3, kind: input, shape index: {}]
  %s4 = inlined_call_operand.hbm [shape: f32[1,1,112], index: 4, kind: output, shape index: {}]
  %s5 = sld [smem:[#allocation0]]
  $region38: #{tpu_custom_call.1} parent=0
    _
  %s7 = ssub.s32 1, %s5
  %s8 = scalar_select 0, %s7, %s5
  $region1: #{tpu_custom_call.1} parent=0
    #allocation2 [shape = 'u8[8192]{0}', space=vmem, size = 0x2000, scoped, tag = 'input window, operand 0, single buffered']
    #allocation3 [shape = 's32[1]{0}', space=sflag, size = 0x4, scoped, tag = 'scoped memory for tpu_custom_call.1']
    #allocation4 [shape = 's32[1]{0}', space=sflag, size = 0x4, scoped, tag = 'scoped memory for tpu_custom_call.1']
    #allocation5 [shape = 'u8[4096]{0}', space=vmem, size = 0x1000, scoped, tag = 'input window, operand 2, single buffered']
    #allocation6 [shape = 's32[1]{0}', space=sflag, size = 0x4, scoped, tag = 'scoped memory for tpu_custom_call.1']
    #allocation7 [shape = 'u8[512]{0}', space=vmem, size = 0x400, scoped, tag = 'output window, operand 0, single buffered']
    %9 = vsyncpa [#allocation3], 0
    %10 = vsyncpa [#allocation6], 0
    %11 = vsyncpa [#allocation4], 0
    // Predicated region
    $region2: #{tpu_custom_call.1} parent=1 // pred_check
      _
    $region3: #{tpu_custom_call.1} parent=1 // pred_check_branch
      %13 = sbr.rel (0) target = $region5
    $region4: #{tpu_custom_call.1} parent=1 // pred_region
      %s15 = ssub.s32 256, 256
      %16 = vsyncadd [#allocation3], %s15
      %s17 = sshll.u32 [#allocation2], 4
      %s18 = int_to_ptr.vmem [resolvable:$true] %s17
      %23 = dma.hbm_to_vmem [thread:$0]  %s0, 256, %s18, [#allocation3], 128, 128, 8
    $region5: #{tpu_custom_call.1} parent=1 // pred_fallthru
      _
    // Predicated region
    $region6: #{tpu_custom_call.1} parent=1 // pred_check
      _
    $region7: #{tpu_custom_call.1} parent=1 // pred_check_branch
      %25 = sbr.rel (0) target = $region9
    $region8: #{tpu_custom_call.1} parent=1 // pred_region
      %s26 = sadd.s32 0, 0
      %p27 = scmp.lt.s32.totalorder %s26, 0
      %s28 = scalar_select %p27, %s26, 0
      %s29 = smul.u32 8, %s28
      %s30 = ssub.s32 1, %s29
      %s31 = smul.u32 16, %s30
      %p32 = scmp.lt.s32.totalorder %s29, 0
      %s33 = scalar_select %p32, %s29, 0
      %s34 = scalar_lea.vmem %s1, %s33
      %s35 = sadd.s32 0, 0
      %p36 = scmp.lt.s32.totalorder %s35, 0
      %s37 = scalar_select %p36, %s35, 0
      %s38 = smul.u32 8, %s37
      %s39 = ssub.s32 1, %s38
      %s40 = smul.u32 16, %s39
    $region9: #{tpu_custom_call.1} parent=1 // pred_fallthru
      _
    // Predicated region
    $region10: #{tpu_custom_call.1} parent=1 // pred_check
      _
    $region11: #{tpu_custom_call.1} parent=1 // pred_check_branch
      %42 = sbr.rel (0) target = $region13
    $region12: #{tpu_custom_call.1} parent=1 // pred_region
      %s43 = sadd.s32 0, 0
      %s45 = ssub.s32 128, 128
      %46 = vsyncadd [#allocation6], %s45
      %s47 = smul.addr %s43, 128
      %s48 = scalar_lea.hbm %s2, %s47
      %s50 = sshll.u32 [#allocation5], 4
      %s51 = int_to_ptr.vmem [resolvable:$true] %s50
      %53 = dma.hbm_to_vmem [thread:$0]  %s48, 128, %s51, [#allocation6]
    $region13: #{tpu_custom_call.1} parent=1 // pred_fallthru
      _
    // Predicated region
    $region14: #{tpu_custom_call.1} parent=1 // pred_check
      _
    $region15: #{tpu_custom_call.1} parent=1 // pred_check_branch
      %55 = sbr.rel (0) target = $region17
    $region16: #{tpu_custom_call.1} parent=1 // pred_region
      %s56 = sadd.s32 0, 0
      %p57 = scmp.lt.s32.totalorder %s56, 0
      %s58 = scalar_select %p57, %s56, 0
      %s59 = smul.addr %s58, 8
      %s60 = scalar_lea.vmem %s3, %s59
      %s61 = sadd.s32 0, 0
    $region17: #{tpu_custom_call.1} parent=1 // pred_fallthru
      _
    // Predicated region
    $region18: #{tpu_custom_call.1} parent=1 // pred_check
      _
    $region19: #{tpu_custom_call.1} parent=1 // pred_check_branch
      %63 = sbr.rel (0) target = $region21
    $region20: #{tpu_custom_call.1} parent=1 // pred_region
      %64 = dma.done [#allocation3], 256
    $region21: #{tpu_custom_call.1} parent=1 // pred_fallthru
      _
    // Predicated region
    $region22: #{tpu_custom_call.1} parent=1 // pred_check
      _
    $region23: #{tpu_custom_call.1} parent=1 // pred_check_branch
      %66 = sbr.rel (0) target = $region25
    $region24: #{tpu_custom_call.1} parent=1 // pred_region
      %67 = dma.done [#allocation6], 128
    $region25: #{tpu_custom_call.1} parent=1 // pred_fallthru
      _
    %s68 = sadd.s32 0, 0
    %p69 = scmp.lt.s32.totalorder %s68, 0
    %s70 = scalar_select %p69, %s68, 0
    %s71 = smul.u32 8, %s70
    %s72 = ssub.s32 1, %s71
    %s73 = smul.u32 16, %s72
    %p74 = scmp.lt.s32.totalorder %s71, 0
    %s75 = scalar_select %p74, %s71, 0
    %s76 = scalar_lea.vmem %s1, %s75
    %s77 = sadd.s32 0, 0
    %p78 = scmp.lt.s32.totalorder %s77, 0
    %s79 = scalar_select %p78, %s77, 0
    %s80 = smul.addr %s79, 8
    %s81 = scalar_lea.vmem %s3, %s80
    %s82 = sadd.s32 0, 0
    %p83 = scmp.lt.s32.totalorder %s82, 0
    %s84 = scalar_select %p83, %s82, 0
    %s85 = smul.u32 8, %s84
    %s86 = ssub.s32 1, %s85
    %s87 = smul.u32 16, %s86
    %p88 = scmp.lt.s32.totalorder %s85, 0
    %s89 = scalar_select %p88, %s85, 0
    %s90 = scalar_lea.vmem %s1, %s89
    %s91 = sadd.s32 0, 0
    %p92 = scmp.lt.s32.totalorder %s91, 0
    %s93 = scalar_select %p92, %s91, 0
    %s94 = smul.u32 8, %s93
    %s95 = ssub.s32 1, %s94
    %s96 = smul.u32 16, %s95
    %s97 = sadd.s32 0, 0
    %s98 = sadd.s32 0, 0
    %p99 = scmp.lt.s32.totalorder %s98, 0
    %s100 = scalar_select %p99, %s98, 0
    %s101 = smul.addr %s100, 8
    %s102 = scalar_lea.vmem %s3, %s101
    %s103 = sadd.s32 0, 0
    %p104 = scmp.eq.s32.totalorder 0, 0
    // Predicated region
    $region26: #{tpu_custom_call.1} parent=1 // pred_check
      %p105 = pneg %p104
    $region27: #{tpu_custom_call.1} parent=1 // pred_check_branch
      %107 = sbr.rel (%p105) target = $region29
    $region28: #{tpu_custom_call.1} parent=1 // pred_region
      %vm108 = vcmask 909312
      %109 = vst.msk [vmem:[#allocation7] sm:$0x1] %vm108, 0.0
    $region29: #{tpu_custom_call.1} parent=1 // pred_fallthru
      _
    %v110 = vld [vmem:[%s90] sm:$0xff]
    %v111 = vld [vmem:[#allocation5] sm:$0xff]
    %v112 = vld [vmem:[%s102] sm:$0xff]
    %v113 = vlaneseq
    %v114 = vand.u32 %v113, 127
    %v115 = vld [vmem:[#allocation2] sm:$0xff]
    %v116 = vld [vmem:[#allocation2 + $0x8] sm:$0xff]
    %v117 = vcvt.s32.f32 %v111
    %vm118 = vcmask 130048
    %v120 = vsel %vm118, %v117, 0
    %122 = vmatprep.subr.mxu0 0.0
    %123 = vmatpush1.msra.mxu0 %v115
    %124 = vmatprep.subr.mxu0 0.0
    %125 = vmatpush1.msra.mxu0 %v116
    %126 = vmatprep.subr.mxu0 0.0
    %127 = vmatpush1.msra.mxu0 0.0
    %128 = vmatprep.subr.mxu0 0.0
    %129 = vmatpush1.msra.mxu0 0.0
    %130 = vmatprep.subr.mxu0 0.0
    %131 = vmatpush1.msra.mxu0 0.0
    %132 = vmatprep.subr.mxu0 0.0
    %133 = vmatpush1.msra.mxu0 0.0
    %134 = vmatprep.subr.mxu0 0.0
    %135 = vmatpush1.msra.mxu0 0.0
    %136 = vmatprep.subr.mxu0 0.0
    %137 = vmatpush1.msra.mxu0 0.0
    %138 = vmatprep.subr.mxu0 0.0
    %139 = vmatpush1.msra.mxu0 0.0
    %140 = vmatprep.subr.mxu0 0.0
    %141 = vmatpush1.msra.mxu0 0.0
    %142 = vmatprep.subr.mxu0 0.0
    %143 = vmatpush1.msra.mxu0 0.0
    %144 = vmatprep.subr.mxu0 0.0
    %145 = vmatpush1.msra.mxu0 0.0
    %146 = vmatprep.subr.mxu0 0.0
    %147 = vmatpush1.msra.mxu0 0.0
    %148 = vmatprep.subr.mxu0 0.0
    %149 = vmatpush1.msra.mxu0 0.0
    %150 = vmatprep.subr.mxu0 0.0
    %151 = vmatpush1.msra.mxu0 0.0
    %152 = vmatprep.subr.mxu0 0.0
    %153 = vmatpush1.msra.mxu0 0.0
    %154 = vmatprep.subr.mxu0 0.0
    %155 = vmatpush1.msra.mxu0 0.0
    %156 = vmatprep.subr.mxu0 0.0
    %157 = vmatpush1.msra.mxu0 0.0
    %158 = vmatprep.subr.mxu0 0.0
    %159 = vmatpush1.msra.mxu0 0.0
    %160 = vmatprep.subr.mxu0 0.0
    %161 = vmatpush1.msra.mxu0 0.0
    %162 = vmatprep.subr.mxu0 0.0
    %163 = vmatpush1.msra.mxu0 0.0
    %164 = vmatprep.subr.mxu0 0.0
    %165 = vmatpush1.msra.mxu0 0.0
    %166 = vmatprep.subr.mxu0 0.0
    %167 = vmatpush1.msra.mxu0 0.0
    %168 = vmatprep.subr.mxu0 0.0
    %169 = vmatpush1.msra.mxu0 0.0
    %170 = vmatprep.subr.mxu0 0.0
    %171 = vmatpush1.msra.mxu0 0.0
    %172 = vmatprep.subr.mxu0 0.0
    %173 = vmatpush1.msra.mxu0 0.0
    %174 = vmatprep.subr.mxu0 0.0
    %175 = vmatpush1.msra.mxu0 0.0
    %176 = vmatprep.subr.mxu0 0.0
    %177 = vmatpush1.msra.mxu0 0.0
    %178 = vmatprep.subr.mxu0 0.0
    %179 = vmatpush1.msra.mxu0 0.0
    %180 = vmatprep.subr.mxu0 0.0
    %181 = vmatpush1.msra.mxu0 0.0
    %182 = vmatprep.subr.mxu0 0.0
    %183 = vmatpush1.msra.mxu0 0.0
    %184 = vmatprep.subr.mxu0 0.0
    %185 = vmatpush1.msra.mxu0 0.0
    %186 = vmatprep.mubr.f32.mxu0 0.0
    %187 = vmatmul.mubr.f32.gmra.mrb[0].mxu0 %v120
    %v188 = vpop.f32.mrb[0].mxu0
    %v189 = vadd.f32 0.0, %v188
    %v190 = vpop.f32.mrb[0].mxu0
    %191 = vdwg.mxu0
    %v193 = vsel %vm118, %v112, 0
    %195 = vmatprep.subr.mxu0 0.0
    %196 = vmatpush1.msra.mxu0 %v115
    %197 = vmatprep.subr.mxu0 0.0
    %198 = vmatpush1.msra.mxu0 %v116
    %199 = vmatprep.subr.mxu0 0.0
    %200 = vmatpush1.msra.mxu0 0.0
    %201 = vmatprep.subr.mxu0 0.0
    %202 = vmatpush1.msra.mxu0 0.0
    %203 = vmatprep.subr.mxu0 0.0
    %204 = vmatpush1.msra.mxu0 0.0
    %205 = vmatprep.subr.mxu0 0.0
    %206 = vmatpush1.msra.mxu0 0.0
    %207 = vmatprep.subr.mxu0 0.0
    %208 = vmatpush1.msra.mxu0 0.0
    %209 = vmatprep.subr.mxu0 0.0
    %210 = vmatpush1.msra.mxu0 0.0
    %211 = vmatprep.subr.mxu0 0.0
    %212 = vmatpush1.msra.mxu0 0.0
    %213 = vmatprep.subr.mxu0 0.0
    %214 = vmatpush1.msra.mxu0 0.0
    %215 = vmatprep.subr.mxu0 0.0
    %216 = vmatpush1.msra.mxu0 0.0
    %217 = vmatprep.subr.mxu0 0.0
    %218 = vmatpush1.msra.mxu0 0.0
    %219 = vmatprep.subr.mxu0 0.0
    %220 = vmatpush1.msra.mxu0 0.0
    %221 = vmatprep.subr.mxu0 0.0
    %222 = vmatpush1.msra.mxu0 0.0
    %223 = vmatprep.subr.mxu0 0.0
    %224 = vmatpush1.msra.mxu0 0.0
    %225 = vmatprep.subr.mxu0 0.0
    %226 = vmatpush1.msra.mxu0 0.0
    %227 = vmatprep.subr.mxu0 0.0
    %228 = vmatpush1.msra.mxu0 0.0
    %229 = vmatprep.subr.mxu0 0.0
    %230 = vmatpush1.msra.mxu0 0.0
    %231 = vmatprep.subr.mxu0 0.0
    %232 = vmatpush1.msra.mxu0 0.0
    %233 = vmatprep.subr.mxu0 0.0
    %234 = vmatpush1.msra.mxu0 0.0
    %235 = vmatprep.subr.mxu0 0.0
    %236 = vmatpush1.msra.mxu0 0.0
    %237 = vmatprep.subr.mxu0 0.0
    %238 = vmatpush1.msra.mxu0 0.0
    %239 = vmatprep.subr.mxu0 0.0
    %240 = vmatpush1.msra.mxu0 0.0
    %241 = vmatprep.subr.mxu0 0.0
    %242 = vmatpush1.msra.mxu0 0.0
    %243 = vmatprep.subr.mxu0 0.0
    %244 = vmatpush1.msra.mxu0 0.0
    %245 = vmatprep.subr.mxu0 0.0
    %246 = vmatpush1.msra.mxu0 0.0
    %247 = vmatprep.subr.mxu0 0.0
    %248 = vmatpush1.msra.mxu0 0.0
    %249 = vmatprep.subr.mxu0 0.0
    %250 = vmatpush1.msra.mxu0 0.0
    %251 = vmatprep.subr.mxu0 0.0
    %252 = vmatpush1.msra.mxu0 0.0
    %253 = vmatprep.subr.mxu0 0.0
    %254 = vmatpush1.msra.mxu0 0.0
    %255 = vmatprep.subr.mxu0 0.0
    %256 = vmatpush1.msra.mxu0 0.0
    %257 = vmatprep.subr.mxu0 0.0
    %258 = vmatpush1.msra.mxu0 0.0
    %259 = vmatprep.mubr.f32.mxu0 0.0
    %260 = vmatmul.mubr.f32.gmra.mrb[0].mxu0 %v193
    %v261 = vpop.f32.mrb[0].mxu0
    %v262 = vadd.f32 0.0, %v261
    %v263 = vpop.f32.mrb[0].mxu0
    %264 = vdwg.mxu0
    %v265 = vcvt.s32.f32 %v114
    %vm266 = vcmp.eq.f32.partialorder %v265, %v189
    %v267 = vsel %vm266, %v110, 0.0
    %v268 = vmul.f32 %v267, %v262
    %v269 = vld [vmem:[#allocation7] sm:$0x1]
    %vm270 = vcmask 916480
    %v271 = vsel %vm270, %v268, 0.0
    %v272 = vrot.slane %v271, 4
    %v273 = vadd.f32 %v271, %v272
    %v274 = vrot.slane %v273, 2
    %v275 = vadd.f32 %v273, %v274
    %v276 = vrot.slane %v275, 1
    %v277 = vadd.f32 %v275, %v276
    %v278 = vadd.f32 %v269, %v277
    %vm279 = vcmask 909312
    %280 = vst.msk [vmem:[#allocation7] sm:$0x1] %vm279, %v278
    // Predicated region
    $region30: #{tpu_custom_call.1} parent=1 // pred_check
      _
    $region31: #{tpu_custom_call.1} parent=1 // pred_check_branch
      %282 = sbr.rel (0) target = $region33
    $region32: #{tpu_custom_call.1} parent=1 // pred_region
      %s284 = ssub.s32 16, 16
      %285 = vsyncadd [#allocation4], %s284
      %s287 = sshll.u32 [#allocation7], 4
      %s288 = int_to_ptr.vmem [resolvable:$true] %s287
      %290 = dma.vmem_to_hbm [thread:$0]  %s288, 16, %s4, [#allocation4]
    $region33: #{tpu_custom_call.1} parent=1 // pred_fallthru
      _
    // Predicated region
    $region34: #{tpu_custom_call.1} parent=1 // pred_check
      _
    $region35: #{tpu_custom_call.1} parent=1 // pred_check_branch
      %292 = sbr.rel (0) target = $region37
    $region36: #{tpu_custom_call.1} parent=1 // pred_region
      %293 = dma.done [#allocation4], 16
    $region37: #{tpu_custom_call.1} parent=1 // pred_fallthru
      _
    %294 = vsyncpa [#allocation3], 1
    %295 = vsyncpa [#allocation6], 1
    %296 = vsyncpa [#allocation4], 1

</llo_original>
